<compile_context>
chip_gen: v7x
topology: tpu7x:2x2x1
jax: 0.10.0
libtpu: 0.0.40
codegen_flags: <defaults>
</compile_context>

<pallas_src>
import functools

import jax
import jax.numpy as jnp
from jax.experimental import pallas as pl
from jax.experimental.pallas import tpu as pltpu


IN_F = 9          # input features (board cells)
OUT_TRUE = 9      # true output width (fc4)
H1 = 512          # 500 padded to 512 (fc1 / fc3 output width)
H2 = 128          # 6   padded to 128 (fc2 output width)
OUT_PAD = 128     # 9   padded to 128 (lane-dense logits / output)

FUSE_MAX_ROWS = 512   # B_pad <= this -> single fused MLP+log_softmax launch
TILE_B = 512          # batch tile for the large-batch (tiled) path


def _round_up(n, m):
    return ((n + m - 1) // m) * m


# ---------------------------------------------------------------------------
# Shared MLP body (bf16 weights / activations on the MXU, f32 accumulation).
# ---------------------------------------------------------------------------
def _mlp_logits(x, w1, b1, w2, b2, w3, b3, w4, b4):
    # x: (TB, 9) bf16
    h = jnp.dot(x, w1, preferred_element_type=jnp.float32) + b1          # (TB, 512)
    h = jnp.maximum(h, 0.0)
    h = jnp.dot(h.astype(jnp.bfloat16), w2,
                preferred_element_type=jnp.float32) + b2                 # (TB, 128)
    h = jnp.maximum(h, 0.0)
    h = jnp.dot(h.astype(jnp.bfloat16), w3,
                preferred_element_type=jnp.float32) + b3                 # (TB, 512)
    h = jnp.maximum(h, 0.0)
    return jnp.dot(h.astype(jnp.bfloat16), w4,
                   preferred_element_type=jnp.float32) + b4              # (TB, 128)


# ---------------------------------------------------------------------------
# Kernel A: fused MLP + dim-0 log_softmax (whole batch in one grid step).
# ---------------------------------------------------------------------------
def mlp_logsoftmax_kernel(x_ref,
                          w1_ref, b1_ref, w2_ref, b2_ref,
                          w3_ref, b3_ref, w4_ref, b4_ref,
                          o_ref, *, n_valid):
    logits = _mlp_logits(x_ref[...],
                         w1_ref[...], b1_ref[...], w2_ref[...], b2_ref[...],
                         w3_ref[...], b3_ref[...], w4_ref[...], b4_ref[...])
    row = jax.lax.broadcasted_iota(jnp.int32, logits.shape, 0)
    masked = jnp.where(row < n_valid, logits, -jnp.inf)   # hide padded rows
    m = jnp.max(masked, axis=0, keepdims=True)
    lse = m + jnp.log(jnp.sum(jnp.exp(masked - m), axis=0, keepdims=True))
    o_ref[...] = logits - lse


# ---------------------------------------------------------------------------
# Kernel B1: batch-tiled MLP producing lane-dense padded logits.
# ---------------------------------------------------------------------------
def mlp_kernel(x_ref,
               w1_ref, b1_ref, w2_ref, b2_ref,
               w3_ref, b3_ref, w4_ref, b4_ref,
               o_ref):
    o_ref[...] = _mlp_logits(x_ref[...],
                             w1_ref[...], b1_ref[...], w2_ref[...], b2_ref[...],
                             w3_ref[...], b3_ref[...], w4_ref[...], b4_ref[...])


# ---------------------------------------------------------------------------
# Kernel B2 (stage A): tiled per-column logsumexp over the batch axis.
# Online max/sum-exp accumulation in resident (1, 128) scratch.
# ---------------------------------------------------------------------------
def lse_stats_kernel(logits_ref, lse_ref, m_sc, l_sc, *, n_valid, tb):
    i = pl.program_id(0)

    @pl.when(i == 0)
    def _():
        m_sc[...] = jnp.full(m_sc.shape, -jnp.inf, jnp.float32)
        l_sc[...] = jnp.zeros(l_sc.shape, jnp.float32)

    logits = logits_ref[...]                               # (tb, 128) f32
    row = jax.lax.broadcasted_iota(jnp.int32, logits.shape, 0) + i * tb
    masked = jnp.where(row < n_valid, logits, -jnp.inf)
    # Tile 0 always holds at least one valid row (n_valid >= 1), so m_new is
    # finite from the first step and no inf-inf NaNs can appear below.
    m_new = jnp.maximum(m_sc[...], jnp.max(masked, axis=0, keepdims=True))
    a = jnp.exp(m_sc[...] - m_new)
    p = jnp.exp(masked - m_new)
    l_sc[...] = a * l_sc[...] + jnp.sum(p, axis=0, keepdims=True)
    m_sc[...] = m_new

    @pl.when(i == pl.num_programs(0) - 1)
    def _():
        lse_ref[...] = m_sc[...] + jnp.log(l_sc[...])


# ---------------------------------------------------------------------------
# Kernel B3 (stage B): logits - lse, tiled over batch.
# ---------------------------------------------------------------------------
def sub_lse_kernel(logits_ref, lse_ref, o_ref):
    o_ref[...] = logits_ref[...] - lse_ref[...]


# ---------------------------------------------------------------------------
# Parameter init (shapes from the PyTorch module) and one-time preparation.
# ---------------------------------------------------------------------------
def init_params(key):
    ks = jax.random.split(key, 8)

    def linear(kw, kb, fan_in, fan_out):
        bound = 1.0 / jnp.sqrt(jnp.float32(fan_in))
        w = jax.random.uniform(kw, (fan_out, fan_in), jnp.float32, -bound, bound)
        b = jax.random.uniform(kb, (fan_out,), jnp.float32, -bound, bound)
        return w, b

    w1, b1 = linear(ks[0], ks[1], 9, 500)
    w2, b2 = linear(ks[2], ks[3], 500, 6)
    w3, b3 = linear(ks[4], ks[5], 6, 500)
    w4, b4 = linear(ks[6], ks[7], 500, 9)
    return (w1, b1, w2, b2, w3, b3, w4, b4)


def prepare_params(params):
    """Transpose / zero-pad / bf16-cast once at model setup (not per forward)."""
    (w1, b1, w2, b2, w3, b3, w4, b4) = params

    def pad2(a, shape):
        out = jnp.zeros(shape, a.dtype)
        return out.at[:a.shape[0], :a.shape[1]].set(a)

    w1t = pad2(w1.T, (IN_F, H1)).astype(jnp.bfloat16)      # (9, 500)  -> (9, 512)
    b1p = pad2(b1[None, :], (1, H1))                        # f32
    w2t = pad2(w2.T, (H1, H2)).astype(jnp.bfloat16)         # (500, 6)  -> (512, 128)
    b2p = pad2(b2[None, :], (1, H2))
    w3t = pad2(w3.T, (H2, H1)).astype(jnp.bfloat16)         # (6, 500)  -> (128, 512)
    b3p = pad2(b3[None, :], (1, H1))
    w4t = pad2(w4.T, (H1, OUT_PAD)).astype(jnp.bfloat16)    # (500, 9)  -> (512, 128)
    b4p = pad2(b4[None, :], (1, OUT_PAD))
    return (w1t, b1p, w2t, b2p, w3t, b3p, w4t, b4p)


# ---------------------------------------------------------------------------
# Forward wrapper.
# ---------------------------------------------------------------------------
def tictactoe_forward(x, prep, tb=None):
    B = x.shape[0]
    B8 = _round_up(B, 8)

    if tb is None:
        # Small/medium batch: whole batch in one tile -> fused log_softmax.
        # Large batch: tb=512 amortizes the ~600-cycle per-step overhead and
        # keeps >=2 grid steps (both v7x TensorCores busy).
        tb = B8 if B8 <= FUSE_MAX_ROWS else TILE_B
    B_pad = _round_up(B, tb)
    n_tiles = B_pad // tb
    fused = (n_tiles == 1)

    # Pad batch and pre-cast to bf16 (board values are exact in bf16).
    x_pad = jnp.zeros((B_pad, IN_F), jnp.bfloat16).at[:B].set(
        x.astype(jnp.bfloat16))

    # Weights/biases: constant block index -> DMA'd once, VMEM-resident.
    weight_specs = [pl.BlockSpec(a.shape, lambda i: (0, 0)) for a in prep]
    x_spec = pl.BlockSpec((tb, IN_F), lambda i: (i, 0))
    logit_spec = pl.BlockSpec((tb, OUT_PAD), lambda i: (i, 0))

    if fused:
        # Single launch: MLP + dim-0 log_softmax, no logits HBM round trip.
        out_full = pl.pallas_call(
            functools.partial(mlp_logsoftmax_kernel, n_valid=B),
            out_shape=jax.ShapeDtypeStruct((B_pad, OUT_PAD), jnp.float32),
            grid_spec=pltpu.PrefetchScalarGridSpec(
                num_scalar_prefetch=0,
                grid=(1,),
                in_specs=[x_spec] + weight_specs,
                out_specs=logit_spec,
            ),
            compiler_params=pltpu.CompilerParams(
                dimension_semantics=("arbitrary",)),
        )(x_pad, *prep)
        return out_full[:B, :OUT_TRUE]

    # ----- Large-batch path: tiled MLP + two-stage log_softmax reduction ----
    # TODO(synk): logits intermediate kept f32 (bf16 would halve its HBM
    # traffic on v5e at a small precision cost).
    logits = pl.pallas_call(
        mlp_kernel,
        out_shape=jax.ShapeDtypeStruct((B_pad, OUT_PAD), jnp.float32),
        grid_spec=pltpu.PrefetchScalarGridSpec(
            num_scalar_prefetch=0,
            grid=(n_tiles,),
            in_specs=[x_spec] + weight_specs,
            out_specs=logit_spec,
        ),
        compiler_params=pltpu.CompilerParams(
            dimension_semantics=("parallel",)),
    )(x_pad, *prep)

    # Stage A: per-column logsumexp over the (masked) batch axis.
    lse = pl.pallas_call(
        functools.partial(lse_stats_kernel, n_valid=B, tb=tb),
        out_shape=jax.ShapeDtypeStruct((1, OUT_PAD), jnp.float32),
        grid_spec=pltpu.PrefetchScalarGridSpec(
            num_scalar_prefetch=0,
            grid=(n_tiles,),
            in_specs=[logit_spec],
            out_specs=pl.BlockSpec((1, OUT_PAD), lambda i: (0, 0)),
            scratch_shapes=[pltpu.VMEM((1, OUT_PAD), jnp.float32),
                            pltpu.VMEM((1, OUT_PAD), jnp.float32)],
        ),
        compiler_params=pltpu.CompilerParams(
            dimension_semantics=("arbitrary",)),
    )(logits)

    # Stage B: logits - lse, tiled over batch.
    out_full = pl.pallas_call(
        sub_lse_kernel,
        out_shape=jax.ShapeDtypeStruct((B_pad, OUT_PAD), jnp.float32),
        grid_spec=pltpu.PrefetchScalarGridSpec(
            num_scalar_prefetch=0,
            grid=(n_tiles,),
            in_specs=[logit_spec,
                      pl.BlockSpec((1, OUT_PAD), lambda i: (0, 0))],
            out_specs=logit_spec,
        ),
        compiler_params=pltpu.CompilerParams(
            dimension_semantics=("parallel",)),
    )(logits, lse)

    return out_full[:B, :OUT_TRUE]


# ---------------------------------------------------------------------------
# Reference (same bf16 weight storage as the kernel, f32 accumulation).
# ---------------------------------------------------------------------------
def reference_forward(x, params):
    (w1, b1, w2, b2, w3, b3, w4, b4) = params

    def lin(h, w, b):
        return jnp.dot(h.astype(jnp.bfloat16), w.T.astype(jnp.bfloat16),
                       preferred_element_type=jnp.float32) + b

    h = jnp.maximum(lin(x, w1, b1), 0.0)
    h = jnp.maximum(lin(h, w2, b2), 0.0)
    h = jnp.maximum(lin(h, w3, b3), 0.0)
    logits = lin(h, w4, b4)
    return jax.nn.log_softmax(logits, axis=0)   # dim=0, as in the PyTorch module


if __name__ == "__main__":
    key = jax.random.PRNGKey(0)
    k_param, k_x = jax.random.split(key)

    params = init_params(k_param)
    prep = prepare_params(params)                     # hoisted: once at setup
    fwd = jax.jit(functools.partial(tictactoe_forward, prep=prep))

    ok = True
    # (B, forced tb):
    #   B=8, B=5  -> fused single-launch path (B=5 exercises padded-row masking)
    #   B=24,tb=16 -> tiled path (MLP + two-stage log_softmax) at a small size
    for B, tb in ((8, None), (5, None), (24, 16)):
        kx = jax.random.fold_in(k_x, B)
        x = jax.random.randint(kx, (B, 9), -1, 2).astype(jnp.float32)

        if tb is None:
            out = fwd(x)
        else:
            out = tictactoe_forward(x, prep, tb=tb)
        out = jax.block_until_ready(out)

        ref = reference_forward(x, params)
        assert out.shape == (B, OUT_TRUE)
        err = float(jnp.max(jnp.abs(out - ref)))
        assert jnp.allclose(out, ref, atol=1e-3, rtol=1e-3), (
            f"mismatch at B={B}, tb={tb}: max abs err {err}")
        ok = ok and bool(jnp.isfinite(out).all())

    assert ok
    print("KERNEL_OK")
</pallas_src>

<mosaic_0001>
module attributes {stable_mosaic.version = 11 : i64} {
  func.func @mlp_logsoftmax_kernel(%arg0: i32, %arg1: memref<8x9xbf16, #tpu.memory_space<vmem>>, %arg2: memref<9x512xbf16, #tpu.memory_space<vmem>>, %arg3: memref<1x512xf32, #tpu.memory_space<vmem>>, %arg4: memref<512x128xbf16, #tpu.memory_space<vmem>>, %arg5: memref<1x128xf32, #tpu.memory_space<vmem>>, %arg6: memref<128x512xbf16, #tpu.memory_space<vmem>>, %arg7: memref<1x512xf32, #tpu.memory_space<vmem>>, %arg8: memref<512x128xbf16, #tpu.memory_space<vmem>>, %arg9: memref<1x128xf32, #tpu.memory_space<vmem>>, %arg10: memref<8x128xf32, #tpu.memory_space<vmem>>) attributes {dimension_semantics = [#tpu.dimension_semantics<arbitrary>], iteration_bounds = array<i64: 1>, scalar_prefetch = 0 : i64, scratch_operands = 0 : i64, tpu.core_type = #tpu.core_type<tc>, window_params = [{transform_indices = @transform_0, window_bounds = array<i64: 8, 9>}, {pipeline_mode = #tpu.pipeline_mode<synchronous>, transform_indices = @transform_1, window_bounds = array<i64: 9, 512>}, {pipeline_mode = #tpu.pipeline_mode<synchronous>, transform_indices = @transform_2, window_bounds = array<i64: 1, 512>}, {pipeline_mode = #tpu.pipeline_mode<synchronous>, transform_indices = @transform_3, window_bounds = array<i64: 512, 128>}, {pipeline_mode = #tpu.pipeline_mode<synchronous>, transform_indices = @transform_4, window_bounds = array<i64: 1, 128>}, {pipeline_mode = #tpu.pipeline_mode<synchronous>, transform_indices = @transform_5, window_bounds = array<i64: 128, 512>}, {pipeline_mode = #tpu.pipeline_mode<synchronous>, transform_indices = @transform_6, window_bounds = array<i64: 1, 512>}, {pipeline_mode = #tpu.pipeline_mode<synchronous>, transform_indices = @transform_7, window_bounds = array<i64: 512, 128>}, {pipeline_mode = #tpu.pipeline_mode<synchronous>, transform_indices = @transform_8, window_bounds = array<i64: 1, 128>}, {transform_indices = @transform_9, window_bounds = array<i64: 8, 128>}]} {
    %c0 = arith.constant 0 : index
    %c0_0 = arith.constant 0 : index
    %0 = vector.load %arg1[%c0, %c0_0] : memref<8x9xbf16, #tpu.memory_space<vmem>>, vector<8x9xbf16>
    %c0_1 = arith.constant 0 : index
    %c0_2 = arith.constant 0 : index
    %1 = vector.load %arg2[%c0_1, %c0_2] : memref<9x512xbf16, #tpu.memory_space<vmem>>, vector<9x512xbf16>
    %c0_3 = arith.constant 0 : index
    %c0_4 = arith.constant 0 : index
    %2 = vector.load %arg3[%c0_3, %c0_4] : memref<1x512xf32, #tpu.memory_space<vmem>>, vector<1x512xf32>
    %c0_5 = arith.constant 0 : index
    %c0_6 = arith.constant 0 : index
    %3 = vector.load %arg4[%c0_5, %c0_6] : memref<512x128xbf16, #tpu.memory_space<vmem>>, vector<512x128xbf16>
    %c0_7 = arith.constant 0 : index
    %c0_8 = arith.constant 0 : index
    %4 = vector.load %arg5[%c0_7, %c0_8] : memref<1x128xf32, #tpu.memory_space<vmem>>, vector<1x128xf32>
    %c0_9 = arith.constant 0 : index
    %c0_10 = arith.constant 0 : index
    %5 = vector.load %arg6[%c0_9, %c0_10] : memref<128x512xbf16, #tpu.memory_space<vmem>>, vector<128x512xbf16>
    %c0_11 = arith.constant 0 : index
    %c0_12 = arith.constant 0 : index
    %6 = vector.load %arg7[%c0_11, %c0_12] : memref<1x512xf32, #tpu.memory_space<vmem>>, vector<1x512xf32>
    %c0_13 = arith.constant 0 : index
    %c0_14 = arith.constant 0 : index
    %7 = vector.load %arg8[%c0_13, %c0_14] : memref<512x128xbf16, #tpu.memory_space<vmem>>, vector<512x128xbf16>
    %c0_15 = arith.constant 0 : index
    %c0_16 = arith.constant 0 : index
    %8 = vector.load %arg9[%c0_15, %c0_16] : memref<1x128xf32, #tpu.memory_space<vmem>>, vector<1x128xf32>
    %cst = arith.constant dense<0.000000e+00> : vector<8x512xf32>
    %9 = tpu.matmul %0, %1, %cst {dimension_numbers = #tpu.dot_dimension_numbers<[1], [0], [0], [1], [0, 0, 1, 1], [], []>} : vector<8x9xbf16>, vector<9x512xbf16>, vector<8x512xf32> -> vector<8x512xf32>
    %10 = vector.broadcast %2 : vector<1x512xf32> to vector<8x512xf32>
    %11 = arith.addf %9, %10 : vector<8x512xf32>
    %cst_17 = arith.constant 0.000000e+00 : f32
    %12 = vector.broadcast %cst_17 : f32 to vector<8x512xf32>
    %13 = arith.maximumf %11, %12 : vector<8x512xf32>
    %14 = arith.truncf %13 : vector<8x512xf32> to vector<8x512xbf16>
    %cst_18 = arith.constant dense<0.000000e+00> : vector<8x128xf32>
    %15 = tpu.matmul %14, %3, %cst_18 {dimension_numbers = #tpu.dot_dimension_numbers<[1], [0], [0], [1], [0, 0, 1, 1], [], []>} : vector<8x512xbf16>, vector<512x128xbf16>, vector<8x128xf32> -> vector<8x128xf32>
    %16 = vector.broadcast %4 : vector<1x128xf32> to vector<8x128xf32>
    %17 = arith.addf %15, %16 : vector<8x128xf32>
    %cst_19 = arith.constant 0.000000e+00 : f32
    %18 = vector.broadcast %cst_19 : f32 to vector<8x128xf32>
    %19 = arith.maximumf %17, %18 : vector<8x128xf32>
    %20 = arith.truncf %19 : vector<8x128xf32> to vector<8x128xbf16>
    %cst_20 = arith.constant dense<0.000000e+00> : vector<8x512xf32>
    %21 = tpu.matmul %20, %5, %cst_20 {dimension_numbers = #tpu.dot_dimension_numbers<[1], [0], [0], [1], [0, 0, 1, 1], [], []>} : vector<8x128xbf16>, vector<128x512xbf16>, vector<8x512xf32> -> vector<8x512xf32>
    %22 = vector.broadcast %6 : vector<1x512xf32> to vector<8x512xf32>
    %23 = arith.addf %21, %22 : vector<8x512xf32>
    %cst_21 = arith.constant 0.000000e+00 : f32
    %24 = vector.broadcast %cst_21 : f32 to vector<8x512xf32>
    %25 = arith.maximumf %23, %24 : vector<8x512xf32>
    %26 = arith.truncf %25 : vector<8x512xf32> to vector<8x512xbf16>
    %cst_22 = arith.constant dense<0.000000e+00> : vector<8x128xf32>
    %27 = tpu.matmul %26, %7, %cst_22 {dimension_numbers = #tpu.dot_dimension_numbers<[1], [0], [0], [1], [0, 0, 1, 1], [], []>} : vector<8x512xbf16>, vector<512x128xbf16>, vector<8x128xf32> -> vector<8x128xf32>
    %28 = vector.broadcast %8 : vector<1x128xf32> to vector<8x128xf32>
    %29 = arith.addf %27, %28 : vector<8x128xf32>
    %30 = tpu.iota {dimensions = array<i32: 0>} : vector<8x128xi32>
    %c8_i32 = arith.constant 8 : i32
    %31 = vector.broadcast %c8_i32 : i32 to vector<8x128xi32>
    %32 = arith.cmpi slt, %30, %31 : vector<8x128xi32>
    %cst_23 = arith.constant 0xFF800000 : f32
    %33 = vector.broadcast %cst_23 : f32 to vector<8x128xf32>
    %34 = arith.select %32, %29, %33 : vector<8x128xi1>, vector<8x128xf32>
    %cst_24 = arith.constant dense<0xFF800000> : vector<128xf32>
    %35 = vector.multi_reduction <maximumf>, %34, %cst_24 [0] : vector<8x128xf32> to vector<128xf32>
    %36 = vector.shape_cast %35 : vector<128xf32> to vector<1x128xf32>
    %37 = vector.broadcast %36 : vector<1x128xf32> to vector<8x128xf32>
    %38 = arith.subf %34, %37 : vector<8x128xf32>
    %39 = math.exp %38 : vector<8x128xf32>
    %cst_25 = arith.constant dense<0.000000e+00> : vector<128xf32>
    %40 = vector.multi_reduction <add>, %39, %cst_25 [0] : vector<8x128xf32> to vector<128xf32>
    %41 = vector.shape_cast %40 : vector<128xf32> to vector<1x128xf32>
    %42 = math.log %41 : vector<1x128xf32>
    %43 = arith.addf %36, %42 : vector<1x128xf32>
    %44 = vector.broadcast %43 : vector<1x128xf32> to vector<8x128xf32>
    %45 = arith.subf %29, %44 : vector<8x128xf32>
    %c0_26 = arith.constant 0 : index
    %c0_27 = arith.constant 0 : index
    %46 = vector.load %arg10[%c0_26, %c0_27] : memref<8x128xf32, #tpu.memory_space<vmem>>, vector<8x128xf32>
    tpu.vector_store %arg10[%c0_26, %c0_27], %45 {strides = array<i32>} : memref<8x128xf32, #tpu.memory_space<vmem>>, vector<8x128xf32>,
    return
  }
  func.func @transform_0(%arg0: i32) -> (i32, i32) {
    %c0_i32 = arith.constant 0 : i32
    %c0_i32_0 = arith.constant 0 : i32
    return %arg0, %c0_i32 : i32, i32
  }
  func.func @transform_1(%arg0: i32) -> (i32, i32) {
    %c0_i32 = arith.constant 0 : i32
    %c0_i32_0 = arith.constant 0 : i32
    %c0_i32_1 = arith.constant 0 : i32
    return %c0_i32, %c0_i32_0 : i32, i32
  }
  func.func @transform_2(%arg0: i32) -> (i32, i32) {
    %c0_i32 = arith.constant 0 : i32
    %c0_i32_0 = arith.constant 0 : i32
    %c0_i32_1 = arith.constant 0 : i32
    return %c0_i32, %c0_i32_0 : i32, i32
  }
  func.func @transform_3(%arg0: i32) -> (i32, i32) {
    %c0_i32 = arith.constant 0 : i32
    %c0_i32_0 = arith.constant 0 : i32
    %c0_i32_1 = arith.constant 0 : i32
    return %c0_i32, %c0_i32_0 : i32, i32
  }
  func.func @transform_4(%arg0: i32) -> (i32, i32) {
    %c0_i32 = arith.constant 0 : i32
    %c0_i32_0 = arith.constant 0 : i32
    %c0_i32_1 = arith.constant 0 : i32
    return %c0_i32, %c0_i32_0 : i32, i32
  }
  func.func @transform_5(%arg0: i32) -> (i32, i32) {
    %c0_i32 = arith.constant 0 : i32
    %c0_i32_0 = arith.constant 0 : i32
    %c0_i32_1 = arith.constant 0 : i32
    return %c0_i32, %c0_i32_0 : i32, i32
  }
  func.func @transform_6(%arg0: i32) -> (i32, i32) {
    %c0_i32 = arith.constant 0 : i32
    %c0_i32_0 = arith.constant 0 : i32
    %c0_i32_1 = arith.constant 0 : i32
    return %c0_i32, %c0_i32_0 : i32, i32
  }
  func.func @transform_7(%arg0: i32) -> (i32, i32) {
    %c0_i32 = arith.constant 0 : i32
    %c0_i32_0 = arith.constant 0 : i32
    %c0_i32_1 = arith.constant 0 : i32
    return %c0_i32, %c0_i32_0 : i32, i32
  }
  func.func @transform_8(%arg0: i32) -> (i32, i32) {
    %c0_i32 = arith.constant 0 : i32
    %c0_i32_0 = arith.constant 0 : i32
    %c0_i32_1 = arith.constant 0 : i32
    return %c0_i32, %c0_i32_0 : i32, i32
  }
  func.func @transform_9(%arg0: i32) -> (i32, i32) {
    %c0_i32 = arith.constant 0 : i32
    %c0_i32_0 = arith.constant 0 : i32
    return %arg0, %c0_i32 : i32, i32
  }
}

</mosaic_0001>

<llo_original>
// kernel: tictactoe_forward.1
$region0: #{tictactoe_forward.1}
  #allocation0 [shape = 'u32[]', space=smem, size = 0x4, offset = 0x4, fixed_abs, tag = 'smem constant byte address 0x4 - core index']
  #allocation1 [shape = 'u32[144,128]{1,0:T(1,128)}', space=vmem, size = 0x12000, scoped, tag = 'internal scratch']
  %s0 = inlined_call_operand.vmem [shape: bf16[8,9], index: 0, kind: input, shape index: {}]
  %s1 = inlined_call_operand.hbm [shape: bf16[9,512], index: 1, kind: input, shape index: {}]
  %s2 = inlined_call_operand.vmem [shape: f32[1,512], index: 2, kind: input, shape index: {}]
  %s3 = inlined_call_operand.vmem [shape: bf16[512,128], index: 3, kind: input, shape index: {}]
  %s4 = inlined_call_operand.vmem [shape: f32[1,128], index: 4, kind: input, shape index: {}]
  %s5 = inlined_call_operand.vmem [shape: bf16[128,512], index: 5, kind: input, shape index: {}]
  %s6 = inlined_call_operand.vmem [shape: f32[1,512], index: 6, kind: input, shape index: {}]
  %s7 = inlined_call_operand.vmem [shape: bf16[512,128], index: 7, kind: input, shape index: {}]
  %s8 = inlined_call_operand.vmem [shape: f32[1,128], index: 8, kind: input, shape index: {}]
  %s9 = inlined_call_operand.hbm [shape: f32[8,128], index: 9, kind: output, shape index: {}]
  %s10 = sld [smem:[#allocation0]]
  $region50: #{tictactoe_forward.1} parent=0
    _
  %s12 = ssub.s32 1, %s10
  %s13 = scalar_select 0, %s12, %s10
  $region1: #{tictactoe_forward.1} parent=0
    #allocation2 [shape = 'u8[16384]{0}', space=vmem, size = 0x4000, scoped, tag = 'input window, operand 1, single buffered']
    #allocation3 [shape = 's32[1]{0}', space=sflag, size = 0x4, scoped, tag = 'scoped memory for tictactoe_forward.1']
    #allocation4 [shape = 's32[1]{0}', space=sflag, size = 0x4, scoped, tag = 'scoped memory for tictactoe_forward.1']
    #allocation5 [shape = 'u8[4096]{0}', space=vmem, size = 0x1000, scoped, tag = 'output window, operand 0, single buffered']
    %14 = vsyncpa [#allocation3], 0
    %15 = vsyncpa [#allocation4], 0
    // Predicated region
    $region2: #{tictactoe_forward.1} parent=1 // pred_check
      _
    $region3: #{tictactoe_forward.1} parent=1 // pred_check_branch
      %17 = sbr.rel (0) target = $region5
    $region4: #{tictactoe_forward.1} parent=1 // pred_region
      _
    $region5: #{tictactoe_forward.1} parent=1 // pred_fallthru
      _
    // Predicated region
    $region6: #{tictactoe_forward.1} parent=1 // pred_check
      _
    $region7: #{tictactoe_forward.1} parent=1 // pred_check_branch
      %19 = sbr.rel (0) target = $region9
    $region8: #{tictactoe_forward.1} parent=1 // pred_region
      %s21 = ssub.s32 512, 512
      %22 = vsyncadd [#allocation3], %s21
      %s23 = sshll.u32 [#allocation2], 4
      %s24 = int_to_ptr.vmem [resolvable:$true] %s23
      %29 = dma.hbm_to_vmem [thread:$0]  %s1, 512, %s24, [#allocation3], 256, 256, 16
    $region9: #{tictactoe_forward.1} parent=1 // pred_fallthru
      _
    // Predicated region
    $region10: #{tictactoe_forward.1} parent=1 // pred_check
      _
    $region11: #{tictactoe_forward.1} parent=1 // pred_check_branch
      %31 = sbr.rel (0) target = $region13
    $region12: #{tictactoe_forward.1} parent=1 // pred_region
      _
    $region13: #{tictactoe_forward.1} parent=1 // pred_fallthru
      _
    // Predicated region
    $region14: #{tictactoe_forward.1} parent=1 // pred_check
      _
    $region15: #{tictactoe_forward.1} parent=1 // pred_check_branch
      %33 = sbr.rel (0) target = $region17
    $region16: #{tictactoe_forward.1} parent=1 // pred_region
      _
    $region17: #{tictactoe_forward.1} parent=1 // pred_fallthru
      _
    // Predicated region
    $region18: #{tictactoe_forward.1} parent=1 // pred_check
      _
    $region19: #{tictactoe_forward.1} parent=1 // pred_check_branch
      %35 = sbr.rel (0) target = $region21
    $region20: #{tictactoe_forward.1} parent=1 // pred_region
      _
    $region21: #{tictactoe_forward.1} parent=1 // pred_fallthru
      _
    // Predicated region
    $region22: #{tictactoe_forward.1} parent=1 // pred_check
      _
    $region23: #{tictactoe_forward.1} parent=1 // pred_check_branch
      %37 = sbr.rel (0) target = $region25
    $region24: #{tictactoe_forward.1} parent=1 // pred_region
      _
    $region25: #{tictactoe_forward.1} parent=1 // pred_fallthru
      _
    // Predicated region
    $region26: #{tictactoe_forward.1} parent=1 // pred_check
      _
    $region27: #{tictactoe_forward.1} parent=1 // pred_check_branch
      %39 = sbr.rel (0) target = $region29
    $region28: #{tictactoe_forward.1} parent=1 // pred_region
      _
    $region29: #{tictactoe_forward.1} parent=1 // pred_fallthru
      _
    // Predicated region
    $region30: #{tictactoe_forward.1} parent=1 // pred_check
      _
    $region31: #{tictactoe_forward.1} parent=1 // pred_check_branch
      %41 = sbr.rel (0) target = $region33
    $region32: #{tictactoe_forward.1} parent=1 // pred_region
      _
    $region33: #{tictactoe_forward.1} parent=1 // pred_fallthru
      _
    // Predicated region
    $region34: #{tictactoe_forward.1} parent=1 // pred_check
      _
    $region35: #{tictactoe_forward.1} parent=1 // pred_check_branch
      %43 = sbr.rel (0) target = $region37
    $region36: #{tictactoe_forward.1} parent=1 // pred_region
      _
    $region37: #{tictactoe_forward.1} parent=1 // pred_fallthru
      _
    // Predicated region
    $region38: #{tictactoe_forward.1} parent=1 // pred_check
      _
    $region39: #{tictactoe_forward.1} parent=1 // pred_check_branch
      %45 = sbr.rel (0) target = $region41
    $region40: #{tictactoe_forward.1} parent=1 // pred_region
      %46 = dma.done [#allocation3], 512
    $region41: #{tictactoe_forward.1} parent=1 // pred_fallthru
      _
    %v48 = vld [vmem:[%s0] sm:$0xf]
    %v49 = vld [vmem:[#allocation2] sm:$0xff]
    %v50 = vld [vmem:[#allocation2 + $0x8] sm:$0xff]
    %v51 = vld [vmem:[#allocation2 + $0x10] sm:$0x11]
    %v52 = vld [vmem:[#allocation2 + $0x18] sm:$0x11]
    %v53 = vld [vmem:[%s2] sm:$0xf]
    %v54 = vld [vmem:[%s3] sm:$0xf]
    %v55 = vld [vmem:[%s3 + $0x4] sm:$0xf]
    %v56 = vld [vmem:[%s3 + $0x8] sm:$0xf]
    %v57 = vld [vmem:[%s3 + $0xc] sm:$0xf]
    %v58 = vld [vmem:[%s3 + $0x10] sm:$0xf]
    %v59 = vld [vmem:[%s3 + $0x14] sm:$0xf]
    %v60 = vld [vmem:[%s3 + $0x18] sm:$0xf]
    %v61 = vld [vmem:[%s3 + $0x1c] sm:$0xf]
    %v62 = vld [vmem:[%s3 + $0x20] sm:$0xf]
    %v63 = vld [vmem:[%s3 + $0x24] sm:$0xf]
    %v64 = vld [vmem:[%s3 + $0x28] sm:$0xf]
    %v65 = vld [vmem:[%s3 + $0x2c] sm:$0xf]
    %v66 = vld [vmem:[%s3 + $0x30] sm:$0xf]
    %v67 = vld [vmem:[%s3 + $0x34] sm:$0xf]
    %v68 = vld [vmem:[%s3 + $0x38] sm:$0xf]
    %v69 = vld [vmem:[%s3 + $0x3c] sm:$0xf]
    %v70 = vld [vmem:[%s3 + $0x40] sm:$0xf]
    %v71 = vld [vmem:[%s3 + $0x44] sm:$0xf]
    %v72 = vld [vmem:[%s3 + $0x48] sm:$0xf]
    %v73 = vld [vmem:[%s3 + $0x4c] sm:$0xf]
    %v74 = vld [vmem:[%s3 + $0x50] sm:$0xf]
    %v75 = vld [vmem:[%s3 + $0x54] sm:$0xf]
    %v76 = vld [vmem:[%s3 + $0x58] sm:$0xf]
    %v77 = vld [vmem:[%s3 + $0x5c] sm:$0xf]
    %v78 = vld [vmem:[%s3 + $0x60] sm:$0xf]
    %v79 = vld [vmem:[%s3 + $0x64] sm:$0xf]
    %v80 = vld [vmem:[%s3 + $0x68] sm:$0xf]
    %v81 = vld [vmem:[%s3 + $0x6c] sm:$0xf]
    %v82 = vld [vmem:[%s3 + $0x70] sm:$0xf]
    %v83 = vld [vmem:[%s3 + $0x74] sm:$0xf]
    %v84 = vld [vmem:[%s3 + $0x78] sm:$0xf]
    %v85 = vld [vmem:[%s3 + $0x7c] sm:$0xf]
    %v86 = vld [vmem:[%s3 + $0x80] sm:$0xf]
    %v87 = vld [vmem:[%s3 + $0x84] sm:$0xf]
    %v88 = vld [vmem:[%s3 + $0x88] sm:$0xf]
    %v89 = vld [vmem:[%s3 + $0x8c] sm:$0xf]
    %v90 = vld [vmem:[%s3 + $0x90] sm:$0xf]
    %v91 = vld [vmem:[%s3 + $0x94] sm:$0xf]
    %v92 = vld [vmem:[%s3 + $0x98] sm:$0xf]
    %v93 = vld [vmem:[%s3 + $0x9c] sm:$0xf]
    %v94 = vld [vmem:[%s3 + $0xa0] sm:$0xf]
    %v95 = vld [vmem:[%s3 + $0xa4] sm:$0xf]
    %v96 = vld [vmem:[%s3 + $0xa8] sm:$0xf]
    %v97 = vld [vmem:[%s3 + $0xac] sm:$0xf]
    %v98 = vld [vmem:[%s3 + $0xb0] sm:$0xf]
    %v99 = vld [vmem:[%s3 + $0xb4] sm:$0xf]
    %v100 = vld [vmem:[%s3 + $0xb8] sm:$0xf]
    %v101 = vld [vmem:[%s3 + $0xbc] sm:$0xf]
    %v102 = vld [vmem:[%s3 + $0xc0] sm:$0xf]
    %v103 = vld [vmem:[%s3 + $0xc4] sm:$0xf]
    %v104 = vld [vmem:[%s3 + $0xc8] sm:$0xf]
    %v105 = vld [vmem:[%s3 + $0xcc] sm:$0xf]
    %v106 = vld [vmem:[%s3 + $0xd0] sm:$0xf]
    %v107 = vld [vmem:[%s3 + $0xd4] sm:$0xf]
    %v108 = vld [vmem:[%s3 + $0xd8] sm:$0xf]
    %v109 = vld [vmem:[%s3 + $0xdc] sm:$0xf]
    %v110 = vld [vmem:[%s3 + $0xe0] sm:$0xf]
    %v111 = vld [vmem:[%s3 + $0xe4] sm:$0xf]
    %v112 = vld [vmem:[%s3 + $0xe8] sm:$0xf]
    %v113 = vld [vmem:[%s3 + $0xec] sm:$0xf]
    %v114 = vld [vmem:[%s3 + $0xf0] sm:$0xf]
    %v115 = vld [vmem:[%s3 + $0xf4] sm:$0xf]
    %v116 = vld [vmem:[%s3 + $0xf8] sm:$0xf]
    %v117 = vld [vmem:[%s3 + $0xfc] sm:$0xf]
    %v118 = vld [vmem:[%s4] sm:$0x1]
    %v119 = vld [vmem:[%s5] sm:$0xff]
    %v120 = vld [vmem:[%s5 + $0x8] sm:$0xff]
    %v121 = vld [vmem:[%s5 + $0x10] sm:$0xff]
    %v122 = vld [vmem:[%s5 + $0x18] sm:$0xff]
    %v123 = vld [vmem:[%s5 + $0x20] sm:$0xff]
    %v124 = vld [vmem:[%s5 + $0x28] sm:$0xff]
    %v125 = vld [vmem:[%s5 + $0x30] sm:$0xff]
    %v126 = vld [vmem:[%s5 + $0x38] sm:$0xff]
    %v127 = vld [vmem:[%s5 + $0x40] sm:$0xff]
    %v128 = vld [vmem:[%s5 + $0x48] sm:$0xff]
    %v129 = vld [vmem:[%s5 + $0x50] sm:$0xff]
    %v130 = vld [vmem:[%s5 + $0x58] sm:$0xff]
    %v131 = vld [vmem:[%s5 + $0x60] sm:$0xff]
    %v132 = vld [vmem:[%s5 + $0x68] sm:$0xff]
    %v133 = vld [vmem:[%s5 + $0x70] sm:$0xff]
    %v134 = vld [vmem:[%s5 + $0x78] sm:$0xff]
    %v135 = vld [vmem:[%s5 + $0x80] sm:$0xff]
    %v136 = vld [vmem:[%s5 + $0x88] sm:$0xff]
    %v137 = vld [vmem:[%s5 + $0x90] sm:$0xff]
    %v138 = vld [vmem:[%s5 + $0x98] sm:$0xff]
    %v139 = vld [vmem:[%s5 + $0xa0] sm:$0xff]
    %v140 = vld [vmem:[%s5 + $0xa8] sm:$0xff]
    %v141 = vld [vmem:[%s5 + $0xb0] sm:$0xff]
    %v142 = vld [vmem:[%s5 + $0xb8] sm:$0xff]
    %v143 = vld [vmem:[%s5 + $0xc0] sm:$0xff]
    %v144 = vld [vmem:[%s5 + $0xc8] sm:$0xff]
    %v145 = vld [vmem:[%s5 + $0xd0] sm:$0xff]
    %v146 = vld [vmem:[%s5 + $0xd8] sm:$0xff]
    %v147 = vld [vmem:[%s5 + $0xe0] sm:$0xff]
    %v148 = vld [vmem:[%s5 + $0xe8] sm:$0xff]
    %v149 = vld [vmem:[%s5 + $0xf0] sm:$0xff]
    %v150 = vld [vmem:[%s5 + $0xf8] sm:$0xff]
    %v151 = vld [vmem:[%s6] sm:$0xf]
    %v152 = vld [vmem:[%s7] sm:$0xf]
    %v153 = vld [vmem:[%s7 + $0x4] sm:$0xf]
    %v154 = vld [vmem:[%s7 + $0x8] sm:$0xf]
    %v155 = vld [vmem:[%s7 + $0xc] sm:$0xf]
    %v156 = vld [vmem:[%s7 + $0x10] sm:$0xf]
    %v157 = vld [vmem:[%s7 + $0x14] sm:$0xf]
    %v158 = vld [vmem:[%s7 + $0x18] sm:$0xf]
    %v159 = vld [vmem:[%s7 + $0x1c] sm:$0xf]
    %v160 = vld [vmem:[%s7 + $0x20] sm:$0xf]
    %v161 = vld [vmem:[%s7 + $0x24] sm:$0xf]
    %v162 = vld [vmem:[%s7 + $0x28] sm:$0xf]
    %v163 = vld [vmem:[%s7 + $0x2c] sm:$0xf]
    %v164 = vld [vmem:[%s7 + $0x30] sm:$0xf]
    %v165 = vld [vmem:[%s7 + $0x34] sm:$0xf]
    %v166 = vld [vmem:[%s7 + $0x38] sm:$0xf]
    %v167 = vld [vmem:[%s7 + $0x3c] sm:$0xf]
    %v168 = vld [vmem:[%s7 + $0x40] sm:$0xf]
    %v169 = vld [vmem:[%s7 + $0x44] sm:$0xf]
    %v170 = vld [vmem:[%s7 + $0x48] sm:$0xf]
    %v171 = vld [vmem:[%s7 + $0x4c] sm:$0xf]
    %v172 = vld [vmem:[%s7 + $0x50] sm:$0xf]
    %v173 = vld [vmem:[%s7 + $0x54] sm:$0xf]
    %v174 = vld [vmem:[%s7 + $0x58] sm:$0xf]
    %v175 = vld [vmem:[%s7 + $0x5c] sm:$0xf]
    %v176 = vld [vmem:[%s7 + $0x60] sm:$0xf]
    %v177 = vld [vmem:[%s7 + $0x64] sm:$0xf]
    %v178 = vld [vmem:[%s7 + $0x68] sm:$0xf]
    %v179 = vld [vmem:[%s7 + $0x6c] sm:$0xf]
    %v180 = vld [vmem:[%s7 + $0x70] sm:$0xf]
    %v181 = vld [vmem:[%s7 + $0x74] sm:$0xf]
    %v182 = vld [vmem:[%s7 + $0x78] sm:$0xf]
    %v183 = vld [vmem:[%s7 + $0x7c] sm:$0xf]
    %v184 = vld [vmem:[%s7 + $0x80] sm:$0xf]
    %v185 = vld [vmem:[%s7 + $0x84] sm:$0xf]
    %v186 = vld [vmem:[%s7 + $0x88] sm:$0xf]
    %v187 = vld [vmem:[%s7 + $0x8c] sm:$0xf]
    %v188 = vld [vmem:[%s7 + $0x90] sm:$0xf]
    %v189 = vld [vmem:[%s7 + $0x94] sm:$0xf]
    %v190 = vld [vmem:[%s7 + $0x98] sm:$0xf]
    %v191 = vld [vmem:[%s7 + $0x9c] sm:$0xf]
    %v192 = vld [vmem:[%s7 + $0xa0] sm:$0xf]
    %v193 = vld [vmem:[%s7 + $0xa4] sm:$0xf]
    %v194 = vld [vmem:[%s7 + $0xa8] sm:$0xf]
    %v195 = vld [vmem:[%s7 + $0xac] sm:$0xf]
    %v196 = vld [vmem:[%s7 + $0xb0] sm:$0xf]
    %v197 = vld [vmem:[%s7 + $0xb4] sm:$0xf]
    %v198 = vld [vmem:[%s7 + $0xb8] sm:$0xf]
    %v199 = vld [vmem:[%s7 + $0xbc] sm:$0xf]
    %v200 = vld [vmem:[%s7 + $0xc0] sm:$0xf]
    %v201 = vld [vmem:[%s7 + $0xc4] sm:$0xf]
    %v202 = vld [vmem:[%s7 + $0xc8] sm:$0xf]
    %v203 = vld [vmem:[%s7 + $0xcc] sm:$0xf]
    %v204 = vld [vmem:[%s7 + $0xd0] sm:$0xf]
    %v205 = vld [vmem:[%s7 + $0xd4] sm:$0xf]
    %v206 = vld [vmem:[%s7 + $0xd8] sm:$0xf]
    %v207 = vld [vmem:[%s7 + $0xdc] sm:$0xf]
    %v208 = vld [vmem:[%s7 + $0xe0] sm:$0xf]
    %v209 = vld [vmem:[%s7 + $0xe4] sm:$0xf]
    %v210 = vld [vmem:[%s7 + $0xe8] sm:$0xf]
    %v211 = vld [vmem:[%s7 + $0xec] sm:$0xf]
    %v212 = vld [vmem:[%s7 + $0xf0] sm:$0xf]
    %v213 = vld [vmem:[%s7 + $0xf4] sm:$0xf]
    %v214 = vld [vmem:[%s7 + $0xf8] sm:$0xf]
    %v215 = vld [vmem:[%s7 + $0xfc] sm:$0xf]
    %v216 = vld [vmem:[%s8] sm:$0x1]
    %v218 = vlaneseq
    %v219 = vshrl.u32 %v218, 7
    %v220 = vsub.s32 0, %v219
    %v221 = vrot.slane %v53, %v220
    %v222 = vlaneseq
    %v223 = vshrl.u32 %v222, 7
    %v224 = vsub.s32 1, %v223
    %v225 = vrot.slane %v53, %v224
    %v226 = vlaneseq
    %v227 = vshrl.u32 %v226, 7
    %v228 = vsub.s32 2, %v227
    %v229 = vrot.slane %v53, %v228
    %v230 = vlaneseq
    %v231 = vshrl.u32 %v230, 7
    %v232 = vsub.s32 3, %v231
    %v233 = vrot.slane %v53, %v232
    %v242 = vunpack.c.l.b16 %v49
    %v243 = vunpack.c.h.b16 %v49
    %v244 = vunpack.c.l.b16 %v50
    %v245 = vunpack.c.h.b16 %v50
    %v246 = vunpack.c.l.b16 %v51
    %v247 = vunpack.c.h.b16 %v51
    %v248 = vunpack.c.l.b16 %v52
    %v249 = vunpack.c.h.b16 %v52
    %v250 = vpack.c.b16 %v246, %v242
    %v251 = vpack.c.b16 %v247, %v243
    %v252 = vpack.c.b16 %v248, %v244
    %v253 = vpack.c.b16 %v249, %v245
    %vm254 = vcmask 72704
    %v256 = vsel %vm254, %v48, 0
    %vm258 = vcmask 1043456
    %vm259 = vcmask 1044480
    %v260 = vsel %vm258, 4294967295, 65535
    %v261 = vsel %vm259, %v260, 0
    %v263 = vand.u32 %v250, %v261
    %v266 = vand.u32 %v251, %v261
    %v269 = vand.u32 %v252, %v261
    %v272 = vand.u32 %v253, %v261
    %274 = vmatprep.subr.bf16.mxu0 %v266
    %275 = vmatpush1.bf16.msra.mxu0 %v263
    %276 = vmatprep.subr.bf16.mxu0 0
    %277 = vmatpush1.bf16.msra.mxu0 0
    %278 = vmatprep.subr.bf16.mxu0 0
    %279 = vmatpush1.bf16.msra.mxu0 0
    %280 = vmatprep.subr.bf16.mxu0 0
    %281 = vmatpush1.bf16.msra.mxu0 0
    %282 = vmatprep.subr.bf16.mxu0 0
    %283 = vmatpush1.bf16.msra.mxu0 0
    %284 = vmatprep.subr.bf16.mxu0 0
    %285 = vmatpush1.bf16.msra.mxu0 0
    %286 = vmatprep.subr.bf16.mxu0 0
    %287 = vmatpush1.bf16.msra.mxu0 0
    %288 = vmatprep.subr.bf16.mxu0 0
    %289 = vmatpush1.bf16.msra.mxu0 0
    %290 = vmatprep.subr.bf16.mxu0 0
    %291 = vmatpush1.bf16.msra.mxu0 0
    %292 = vmatprep.subr.bf16.mxu0 0
    %293 = vmatpush1.bf16.msra.mxu0 0
    %294 = vmatprep.subr.bf16.mxu0 0
    %295 = vmatpush1.bf16.msra.mxu0 0
    %296 = vmatprep.subr.bf16.mxu0 0
    %297 = vmatpush1.bf16.msra.mxu0 0
    %298 = vmatprep.subr.bf16.mxu0 0
    %299 = vmatpush1.bf16.msra.mxu0 0
    %300 = vmatprep.subr.bf16.mxu0 0
    %301 = vmatpush1.bf16.msra.mxu0 0
    %302 = vmatprep.subr.bf16.mxu0 0
    %303 = vmatpush1.bf16.msra.mxu0 0
    %304 = vmatprep.subr.bf16.mxu0 0
    %305 = vmatpush1.bf16.msra.mxu0 0
    %306 = vmatprep.mubr.bf16.mxu0 0
    %307 = vmatmul.mubr.bf16.gmra.mrb[0].mxu0 %v256
    %v308 = vpop.f32.mrb[0].mxu0
    %v309 = vadd.f32 %v221, %v308
    %v310 = vpop.f32.mrb[0].mxu0
    %v311 = vadd.f32 %v225, %v310
    %v312 = vpop.f32.mrb[0].mxu0
    %v313 = vpop.f32.mrb[0].mxu0
    %314 = vdwg.mxu0
    %315 = vmatprep.subr.bf16.mxu0 %v272
    %316 = vmatpush1.bf16.msra.mxu0 %v269
    %317 = vmatprep.subr.bf16.mxu0 0
    %318 = vmatpush1.bf16.msra.mxu0 0
    %319 = vmatprep.subr.bf16.mxu0 0
    %320 = vmatpush1.bf16.msra.mxu0 0
    %321 = vmatprep.subr.bf16.mxu0 0
    %322 = vmatpush1.bf16.msra.mxu0 0
    %323 = vmatprep.subr.bf16.mxu0 0
    %324 = vmatpush1.bf16.msra.mxu0 0
    %325 = vmatprep.subr.bf16.mxu0 0
    %326 = vmatpush1.bf16.msra.mxu0 0
    %327 = vmatprep.subr.bf16.mxu0 0
    %328 = vmatpush1.bf16.msra.mxu0 0
    %329 = vmatprep.subr.bf16.mxu0 0
    %330 = vmatpush1.bf16.msra.mxu0 0
    %331 = vmatprep.subr.bf16.mxu0 0
    %332 = vmatpush1.bf16.msra.mxu0 0
    %333 = vmatprep.subr.bf16.mxu0 0
    %334 = vmatpush1.bf16.msra.mxu0 0
    %335 = vmatprep.subr.bf16.mxu0 0
    %336 = vmatpush1.bf16.msra.mxu0 0
    %337 = vmatprep.subr.bf16.mxu0 0
    %338 = vmatpush1.bf16.msra.mxu0 0
    %339 = vmatprep.subr.bf16.mxu0 0
    %340 = vmatpush1.bf16.msra.mxu0 0
    %341 = vmatprep.subr.bf16.mxu0 0
    %342 = vmatpush1.bf16.msra.mxu0 0
    %343 = vmatprep.subr.bf16.mxu0 0
    %344 = vmatpush1.bf16.msra.mxu0 0
    %345 = vmatprep.subr.bf16.mxu0 0
    %346 = vmatpush1.bf16.msra.mxu0 0
    %347 = vmatprep.mubr.bf16.mxu0 0
    %348 = vmatmul.mubr.bf16.gmra.mrb[0].mxu0 %v256
    %v349 = vpop.f32.mrb[0].mxu0
    %v350 = vadd.f32 %v229, %v349
    %v351 = vpop.f32.mrb[0].mxu0
    %v352 = vadd.f32 %v233, %v351
    %v353 = vpop.f32.mrb[0].mxu0
    %v354 = vpop.f32.mrb[0].mxu0
    %355 = vdwg.mxu0
    %v356 = vmax.f32 %v309, 0.0
    %v357 = vmax.f32 %v311, 0.0
    %v358 = vmax.f32 %v350, 0.0
    %v359 = vmax.f32 %v352, 0.0
    %v360 = vpack.c.bf16 %v356, %v356
    %v361 = vpack.c.bf16 %v357, %v357
    %v362 = vpack.c.bf16 %v358, %v358
    %v363 = vpack.c.bf16 %v359, %v359
    %v365 = vlaneseq
    %v366 = vshrl.u32 %v365, 7
    %v367 = vsub.s32 0, %v366
    %v368 = vrot.slane %v118, %v367
    %v434 = vunpack.c.l.b16 %v54
    %v435 = vunpack.c.l.b16 %v55
    %v436 = vunpack.c.l.b16 %v56
    %v437 = vunpack.c.l.b16 %v57
    %v438 = vunpack.c.l.b16 %v58
    %v439 = vunpack.c.l.b16 %v59
    %v440 = vunpack.c.l.b16 %v60
    %v441 = vunpack.c.l.b16 %v61
    %v442 = vunpack.c.l.b16 %v62
    %v443 = vunpack.c.l.b16 %v63
    %v444 = vunpack.c.l.b16 %v64
    %v445 = vunpack.c.l.b16 %v65
    %v446 = vunpack.c.l.b16 %v66
    %v447 = vunpack.c.l.b16 %v67
    %v448 = vunpack.c.l.b16 %v68
    %v449 = vunpack.c.l.b16 %v69
    %v450 = vunpack.c.l.b16 %v70
    %v451 = vunpack.c.l.b16 %v71
    %v452 = vunpack.c.l.b16 %v72
    %v453 = vunpack.c.l.b16 %v73
    %v454 = vunpack.c.l.b16 %v74
    %v455 = vunpack.c.l.b16 %v75
    %v456 = vunpack.c.l.b16 %v76
    %v457 = vunpack.c.l.b16 %v77
    %v458 = vunpack.c.l.b16 %v78
    %v459 = vunpack.c.l.b16 %v79
    %v460 = vunpack.c.l.b16 %v80
    %v461 = vunpack.c.l.b16 %v81
    %v462 = vunpack.c.l.b16 %v82
    %v463 = vunpack.c.l.b16 %v83
    %v464 = vunpack.c.l.b16 %v84
    %v465 = vunpack.c.l.b16 %v85
    %v466 = vunpack.c.l.b16 %v86
    %v467 = vunpack.c.l.b16 %v87
    %v468 = vunpack.c.l.b16 %v88
    %v469 = vunpack.c.l.b16 %v89
    %v470 = vunpack.c.l.b16 %v90
    %v471 = vunpack.c.l.b16 %v91
    %v472 = vunpack.c.l.b16 %v92
    %v473 = vunpack.c.l.b16 %v93
    %v474 = vunpack.c.l.b16 %v94
    %v475 = vunpack.c.l.b16 %v95
    %v476 = vunpack.c.l.b16 %v96
    %v477 = vunpack.c.l.b16 %v97
    %v478 = vunpack.c.l.b16 %v98
    %v479 = vunpack.c.l.b16 %v99
    %v480 = vunpack.c.l.b16 %v100
    %v481 = vunpack.c.l.b16 %v101
    %v482 = vunpack.c.l.b16 %v102
    %v483 = vunpack.c.l.b16 %v103
    %v484 = vunpack.c.l.b16 %v104
    %v485 = vunpack.c.l.b16 %v105
    %v486 = vunpack.c.l.b16 %v106
    %v487 = vunpack.c.l.b16 %v107
    %v488 = vunpack.c.l.b16 %v108
    %v489 = vunpack.c.l.b16 %v109
    %v490 = vunpack.c.l.b16 %v110
    %v491 = vunpack.c.l.b16 %v111
    %v492 = vunpack.c.l.b16 %v112
    %v493 = vunpack.c.l.b16 %v113
    %v494 = vunpack.c.l.b16 %v114
    %v495 = vunpack.c.l.b16 %v115
    %v496 = vunpack.c.l.b16 %v116
    %v497 = vunpack.c.l.b16 %v117
    %v498 = vpack.c.b16 %v435, %v434
    %v499 = vpack.c.b16 %v437, %v436
    %v500 = vpack.c.b16 %v439, %v438
    %v501 = vpack.c.b16 %v441, %v440
    %v502 = vpack.c.b16 %v443, %v442
    %v503 = vpack.c.b16 %v445, %v444
    %v504 = vpack.c.b16 %v447, %v446
    %v505 = vpack.c.b16 %v449, %v448
    %v506 = vpack.c.b16 %v451, %v450
    %v507 = vpack.c.b16 %v453, %v452
    %v508 = vpack.c.b16 %v455, %v454
    %v509 = vpack.c.b16 %v457, %v456
    %v510 = vpack.c.b16 %v459, %v458
    %v511 = vpack.c.b16 %v461, %v460
    %v512 = vpack.c.b16 %v463, %v462
    %v513 = vpack.c.b16 %v465, %v464
    %v514 = vpack.c.b16 %v467, %v466
    %v515 = vpack.c.b16 %v469, %v468
    %v516 = vpack.c.b16 %v471, %v470
    %v517 = vpack.c.b16 %v473, %v472
    %v518 = vpack.c.b16 %v475, %v474
    %v519 = vpack.c.b16 %v477, %v476
    %v520 = vpack.c.b16 %v479, %v478
    %v521 = vpack.c.b16 %v481, %v480
    %v522 = vpack.c.b16 %v483, %v482
    %v523 = vpack.c.b16 %v485, %v484
    %v524 = vpack.c.b16 %v487, %v486
    %v525 = vpack.c.b16 %v489, %v488
    %v526 = vpack.c.b16 %v491, %v490
    %v527 = vpack.c.b16 %v493, %v492
    %v528 = vpack.c.b16 %v495, %v494
    %v529 = vpack.c.b16 %v497, %v496
    %562 = vmatprep.subr.bf16.mxu0 0
    %563 = vmatpush1.bf16.msra.mxu0 %v498
    %564 = vmatprep.subr.bf16.mxu0 0
    %565 = vmatpush1.bf16.msra.mxu0 %v499
    %566 = vmatprep.subr.bf16.mxu0 0
    %567 = vmatpush1.bf16.msra.mxu0 %v500
    %568 = vmatprep.subr.bf16.mxu0 0
    %569 = vmatpush1.bf16.msra.mxu0 %v501
    %570 = vmatprep.subr.bf16.mxu0 0
    %571 = vmatpush1.bf16.msra.mxu0 %v502
    %572 = vmatprep.subr.bf16.mxu0 0
    %573 = vmatpush1.bf16.msra.mxu0 %v503
    %574 = vmatprep.subr.bf16.mxu0 0
    %575 = vmatpush1.bf16.msra.mxu0 %v504
    %576 = vmatprep.subr.bf16.mxu0 0
    %577 = vmatpush1.bf16.msra.mxu0 %v505
    %578 = vmatprep.subr.bf16.mxu0 0
    %579 = vmatpush1.bf16.msra.mxu0 %v506
    %580 = vmatprep.subr.bf16.mxu0 0
    %581 = vmatpush1.bf16.msra.mxu0 %v507
    %582 = vmatprep.subr.bf16.mxu0 0
    %583 = vmatpush1.bf16.msra.mxu0 %v508
    %584 = vmatprep.subr.bf16.mxu0 0
    %585 = vmatpush1.bf16.msra.mxu0 %v509
    %586 = vmatprep.subr.bf16.mxu0 0
    %587 = vmatpush1.bf16.msra.mxu0 %v510
    %588 = vmatprep.subr.bf16.mxu0 0
    %589 = vmatpush1.bf16.msra.mxu0 %v511
    %590 = vmatprep.subr.bf16.mxu0 0
    %591 = vmatpush1.bf16.msra.mxu0 %v512
    %592 = vmatprep.subr.bf16.mxu0 0
    %593 = vmatpush1.bf16.msra.mxu0 %v513
    %594 = vmatprep.mubr.bf16.mxu0 %v361
    %595 = vmatmul.mubr.bf16.gmra.mrb[0].mxu0 %v360
    %v596 = vpop.f32.mrb[0].mxu0
    %v597 = vadd.f32 %v368, %v596
    %v598 = vpop.f32.mrb[0].mxu0
    %v599 = vpop.f32.mrb[0].mxu0
    %v600 = vpop.f32.mrb[0].mxu0
    %601 = vdwg.mxu0
    %602 = vmatprep.subr.bf16.mxu0 0
    %603 = vmatpush1.bf16.msra.mxu0 %v514
    %604 = vmatprep.subr.bf16.mxu0 0
    %605 = vmatpush1.bf16.msra.mxu0 %v515
    %606 = vmatprep.subr.bf16.mxu0 0
    %607 = vmatpush1.bf16.msra.mxu0 %v516
    %608 = vmatprep.subr.bf16.mxu0 0
    %609 = vmatpush1.bf16.msra.mxu0 %v517
    %610 = vmatprep.subr.bf16.mxu0 0
    %611 = vmatpush1.bf16.msra.mxu0 %v518
    %612 = vmatprep.subr.bf16.mxu0 0
    %613 = vmatpush1.bf16.msra.mxu0 %v519
    %614 = vmatprep.subr.bf16.mxu0 0
    %615 = vmatpush1.bf16.msra.mxu0 %v520
    %616 = vmatprep.subr.bf16.mxu0 0
    %617 = vmatpush1.bf16.msra.mxu0 %v521
    %618 = vmatprep.subr.bf16.mxu0 0
    %619 = vmatpush1.bf16.msra.mxu0 %v522
    %620 = vmatprep.subr.bf16.mxu0 0
    %621 = vmatpush1.bf16.msra.mxu0 %v523
    %622 = vmatprep.subr.bf16.mxu0 0
    %623 = vmatpush1.bf16.msra.mxu0 %v524
    %624 = vmatprep.subr.bf16.mxu0 0
    %625 = vmatpush1.bf16.msra.mxu0 %v525
    %626 = vmatprep.subr.bf16.mxu0 0
    %627 = vmatpush1.bf16.msra.mxu0 %v526
    %628 = vmatprep.subr.bf16.mxu0 0
    %629 = vmatpush1.bf16.msra.mxu0 %v527
    %630 = vmatprep.subr.bf16.mxu0 0
    %631 = vmatpush1.bf16.msra.mxu0 %v528
    %632 = vmatprep.subr.bf16.mxu0 0
    %633 = vmatpush1.bf16.msra.mxu0 %v529
    %634 = vmatprep.mubr.bf16.mxu0 %v363
    %635 = vmatmul.mubr.bf16.gmra.mrb[0].mxu0 %v362
    %v636 = vpop.f32.mrb[0].mxu0
    %v637 = vadd.f32 %v597, %v636
    %v638 = vpop.f32.mrb[0].mxu0
    %v639 = vpop.f32.mrb[0].mxu0
    %v640 = vpop.f32.mrb[0].mxu0
    %641 = vdwg.mxu0
    %v642 = vmax.f32 %v637, 0.0
    %v643 = vpack.c.bf16 %v642, %v642
    %v645 = vlaneseq
    %v646 = vshrl.u32 %v645, 7
    %v647 = vsub.s32 0, %v646
    %v648 = vrot.slane %v151, %v647
    %v649 = vlaneseq
    %v650 = vshrl.u32 %v649, 7
    %v651 = vsub.s32 1, %v650
    %v652 = vrot.slane %v151, %v651
    %v653 = vlaneseq
    %v654 = vshrl.u32 %v653, 7
    %v655 = vsub.s32 2, %v654
    %v656 = vrot.slane %v151, %v655
    %v657 = vlaneseq
    %v658 = vshrl.u32 %v657, 7
    %v659 = vsub.s32 3, %v658
    %v660 = vrot.slane %v151, %v659
    %v697 = vunpack.c.l.b16 %v119
    %v698 = vunpack.c.h.b16 %v119
    %v699 = vunpack.c.l.b16 %v120
    %v700 = vunpack.c.h.b16 %v120
    %v701 = vunpack.c.l.b16 %v121
    %v702 = vunpack.c.h.b16 %v121
    %v703 = vunpack.c.l.b16 %v122
    %v704 = vunpack.c.h.b16 %v122
    %v705 = vunpack.c.l.b16 %v123
    %v706 = vunpack.c.h.b16 %v123
    %v707 = vunpack.c.l.b16 %v124
    %v708 = vunpack.c.h.b16 %v124
    %v709 = vunpack.c.l.b16 %v125
    %v710 = vunpack.c.h.b16 %v125
    %v711 = vunpack.c.l.b16 %v126
    %v712 = vunpack.c.h.b16 %v126
    %v713 = vunpack.c.l.b16 %v127
    %v714 = vunpack.c.h.b16 %v127
    %v715 = vunpack.c.l.b16 %v128
    %v716 = vunpack.c.h.b16 %v128
    %v717 = vunpack.c.l.b16 %v129
    %v718 = vunpack.c.h.b16 %v129
    %v719 = vunpack.c.l.b16 %v130
    %v720 = vunpack.c.h.b16 %v130
    %v721 = vunpack.c.l.b16 %v131
    %v722 = vunpack.c.h.b16 %v131
    %v723 = vunpack.c.l.b16 %v132
    %v724 = vunpack.c.h.b16 %v132
    %v725 = vunpack.c.l.b16 %v133
    %v726 = vunpack.c.h.b16 %v133
    %v727 = vunpack.c.l.b16 %v134
    %v728 = vunpack.c.h.b16 %v134
    %v729 = vunpack.c.l.b16 %v135
    %v730 = vunpack.c.h.b16 %v135
    %v731 = vunpack.c.l.b16 %v136
    %v732 = vunpack.c.h.b16 %v136
    %v733 = vunpack.c.l.b16 %v137
    %v734 = vunpack.c.h.b16 %v137
    %v735 = vunpack.c.l.b16 %v138
    %v736 = vunpack.c.h.b16 %v138
    %v737 = vunpack.c.l.b16 %v139
    %v738 = vunpack.c.h.b16 %v139
    %v739 = vunpack.c.l.b16 %v140
    %v740 = vunpack.c.h.b16 %v140
    %v741 = vunpack.c.l.b16 %v141
    %v742 = vunpack.c.h.b16 %v141
    %v743 = vunpack.c.l.b16 %v142
    %v744 = vunpack.c.h.b16 %v142
    %v745 = vunpack.c.l.b16 %v143
    %v746 = vunpack.c.h.b16 %v143
    %v747 = vunpack.c.l.b16 %v144
    %v748 = vunpack.c.h.b16 %v144
    %v749 = vunpack.c.l.b16 %v145
    %v750 = vunpack.c.h.b16 %v145
    %v751 = vunpack.c.l.b16 %v146
    %v752 = vunpack.c.h.b16 %v146
    %v753 = vunpack.c.l.b16 %v147
    %v754 = vunpack.c.h.b16 %v147
    %v755 = vunpack.c.l.b16 %v148
    %v756 = vunpack.c.h.b16 %v148
    %v757 = vunpack.c.l.b16 %v149
    %v758 = vunpack.c.h.b16 %v149
    %v759 = vunpack.c.l.b16 %v150
    %v760 = vunpack.c.h.b16 %v150
    %v761 = vpack.c.b16 %v701, %v697
    %v762 = vpack.c.b16 %v702, %v698
    %v763 = vpack.c.b16 %v703, %v699
    %v764 = vpack.c.b16 %v704, %v700
    %v765 = vpack.c.b16 %v709, %v705
    %v766 = vpack.c.b16 %v710, %v706
    %v767 = vpack.c.b16 %v711, %v707
    %v768 = vpack.c.b16 %v712, %v708
    %v769 = vpack.c.b16 %v717, %v713
    %v770 = vpack.c.b16 %v718, %v714
    %v771 = vpack.c.b16 %v719, %v715
    %v772 = vpack.c.b16 %v720, %v716
    %v773 = vpack.c.b16 %v725, %v721
    %v774 = vpack.c.b16 %v726, %v722
    %v775 = vpack.c.b16 %v727, %v723
    %v776 = vpack.c.b16 %v728, %v724
    %v777 = vpack.c.b16 %v733, %v729
    %v778 = vpack.c.b16 %v734, %v730
    %v779 = vpack.c.b16 %v735, %v731
    %v780 = vpack.c.b16 %v736, %v732
    %v781 = vpack.c.b16 %v741, %v737
    %v782 = vpack.c.b16 %v742, %v738
    %v783 = vpack.c.b16 %v743, %v739
    %v784 = vpack.c.b16 %v744, %v740
    %v785 = vpack.c.b16 %v749, %v745
    %v786 = vpack.c.b16 %v750, %v746
    %v787 = vpack.c.b16 %v751, %v747
    %v788 = vpack.c.b16 %v752, %v748
    %v789 = vpack.c.b16 %v757, %v753
    %v790 = vpack.c.b16 %v758, %v754
    %v791 = vpack.c.b16 %v759, %v755
    %v792 = vpack.c.b16 %v760, %v756
    %825 = vmatprep.subr.bf16.mxu0 %v762
    %826 = vmatpush1.bf16.msra.mxu0 %v761
    %827 = vmatprep.subr.bf16.mxu0 %v766
    %828 = vmatpush1.bf16.msra.mxu0 %v765
    %829 = vmatprep.subr.bf16.mxu0 %v770
    %830 = vmatpush1.bf16.msra.mxu0 %v769
    %831 = vmatprep.subr.bf16.mxu0 %v774
    %832 = vmatpush1.bf16.msra.mxu0 %v773
    %833 = vmatprep.subr.bf16.mxu0 %v778
    %834 = vmatpush1.bf16.msra.mxu0 %v777
    %835 = vmatprep.subr.bf16.mxu0 %v782
    %836 = vmatpush1.bf16.msra.mxu0 %v781
    %837 = vmatprep.subr.bf16.mxu0 %v786
    %838 = vmatpush1.bf16.msra.mxu0 %v785
    %839 = vmatprep.subr.bf16.mxu0 %v790
    %840 = vmatpush1.bf16.msra.mxu0 %v789
    %841 = vmatprep.subr.bf16.mxu0 0
    %842 = vmatpush1.bf16.msra.mxu0 0
    %843 = vmatprep.subr.bf16.mxu0 0
    %844 = vmatpush1.bf16.msra.mxu0 0
    %845 = vmatprep.subr.bf16.mxu0 0
    %846 = vmatpush1.bf16.msra.mxu0 0
    %847 = vmatprep.subr.bf16.mxu0 0
    %848 = vmatpush1.bf16.msra.mxu0 0
    %849 = vmatprep.subr.bf16.mxu0 0
    %850 = vmatpush1.bf16.msra.mxu0 0
    %851 = vmatprep.subr.bf16.mxu0 0
    %852 = vmatpush1.bf16.msra.mxu0 0
    %853 = vmatprep.subr.bf16.mxu0 0
    %854 = vmatpush1.bf16.msra.mxu0 0
    %855 = vmatprep.subr.bf16.mxu0 0
    %856 = vmatpush1.bf16.msra.mxu0 0
    %857 = vmatprep.mubr.bf16.mxu0 0
    %858 = vmatmul.mubr.bf16.gmra.mrb[0].mxu0 %v643
    %v859 = vpop.f32.mrb[0].mxu0
    %v860 = vadd.f32 %v648, %v859
    %v861 = vpop.f32.mrb[0].mxu0
    %v862 = vadd.f32 %v652, %v861
    %v863 = vpop.f32.mrb[0].mxu0
    %v864 = vpop.f32.mrb[0].mxu0
    %865 = vdwg.mxu0
    %866 = vmatprep.subr.bf16.mxu0 %v764
    %867 = vmatpush1.bf16.msra.mxu0 %v763
    %868 = vmatprep.subr.bf16.mxu0 %v768
    %869 = vmatpush1.bf16.msra.mxu0 %v767
    %870 = vmatprep.subr.bf16.mxu0 %v772
    %871 = vmatpush1.bf16.msra.mxu0 %v771
    %872 = vmatprep.subr.bf16.mxu0 %v776
    %873 = vmatpush1.bf16.msra.mxu0 %v775
    %874 = vmatprep.subr.bf16.mxu0 %v780
    %875 = vmatpush1.bf16.msra.mxu0 %v779
    %876 = vmatprep.subr.bf16.mxu0 %v784
    %877 = vmatpush1.bf16.msra.mxu0 %v783
    %878 = vmatprep.subr.bf16.mxu0 %v788
    %879 = vmatpush1.bf16.msra.mxu0 %v787
    %880 = vmatprep.subr.bf16.mxu0 %v792
    %881 = vmatpush1.bf16.msra.mxu0 %v791
    %882 = vmatprep.subr.bf16.mxu0 0
    %883 = vmatpush1.bf16.msra.mxu0 0
    %884 = vmatprep.subr.bf16.mxu0 0
    %885 = vmatpush1.bf16.msra.mxu0 0
    %886 = vmatprep.subr.bf16.mxu0 0
    %887 = vmatpush1.bf16.msra.mxu0 0
    %888 = vmatprep.subr.bf16.mxu0 0
    %889 = vmatpush1.bf16.msra.mxu0 0
    %890 = vmatprep.subr.bf16.mxu0 0
    %891 = vmatpush1.bf16.msra.mxu0 0
    %892 = vmatprep.subr.bf16.mxu0 0
    %893 = vmatpush1.bf16.msra.mxu0 0
    %894 = vmatprep.subr.bf16.mxu0 0
    %895 = vmatpush1.bf16.msra.mxu0 0
    %896 = vmatprep.subr.bf16.mxu0 0
    %897 = vmatpush1.bf16.msra.mxu0 0
    %898 = vmatprep.mubr.bf16.mxu0 0
    %899 = vmatmul.mubr.bf16.gmra.mrb[0].mxu0 %v643
    %v900 = vpop.f32.mrb[0].mxu0
    %v901 = vadd.f32 %v656, %v900
    %v902 = vpop.f32.mrb[0].mxu0
    %v903 = vadd.f32 %v660, %v902
    %v904 = vpop.f32.mrb[0].mxu0
    %v905 = vpop.f32.mrb[0].mxu0
    %906 = vdwg.mxu0
    %v907 = vmax.f32 %v860, 0.0
    %v908 = vmax.f32 %v862, 0.0
    %v909 = vmax.f32 %v901, 0.0
    %v910 = vmax.f32 %v903, 0.0
    %v911 = vpack.c.bf16 %v907, %v907
    %v912 = vpack.c.bf16 %v908, %v908
    %v913 = vpack.c.bf16 %v909, %v909
    %v914 = vpack.c.bf16 %v910, %v910
    %v916 = vlaneseq
    %v917 = vshrl.u32 %v916, 7
    %v918 = vsub.s32 0, %v917
    %v919 = vrot.slane %v216, %v918
    %v985 = vunpack.c.l.b16 %v152
    %v986 = vunpack.c.l.b16 %v153
    %v987 = vunpack.c.l.b16 %v154
    %v988 = vunpack.c.l.b16 %v155
    %v989 = vunpack.c.l.b16 %v156
    %v990 = vunpack.c.l.b16 %v157
    %v991 = vunpack.c.l.b16 %v158
    %v992 = vunpack.c.l.b16 %v159
    %v993 = vunpack.c.l.b16 %v160
    %v994 = vunpack.c.l.b16 %v161
    %v995 = vunpack.c.l.b16 %v162
    %v996 = vunpack.c.l.b16 %v163
    %v997 = vunpack.c.l.b16 %v164
    %v998 = vunpack.c.l.b16 %v165
    %v999 = vunpack.c.l.b16 %v166
    %v1000 = vunpack.c.l.b16 %v167
    %v1001 = vunpack.c.l.b16 %v168
    %v1002 = vunpack.c.l.b16 %v169
    %v1003 = vunpack.c.l.b16 %v170
    %v1004 = vunpack.c.l.b16 %v171
    %v1005 = vunpack.c.l.b16 %v172
    %v1006 = vunpack.c.l.b16 %v173
    %v1007 = vunpack.c.l.b16 %v174
    %v1008 = vunpack.c.l.b16 %v175
    %v1009 = vunpack.c.l.b16 %v176
    %v1010 = vunpack.c.l.b16 %v177
    %v1011 = vunpack.c.l.b16 %v178
    %v1012 = vunpack.c.l.b16 %v179
    %v1013 = vunpack.c.l.b16 %v180
    %v1014 = vunpack.c.l.b16 %v181
    %v1015 = vunpack.c.l.b16 %v182
    %v1016 = vunpack.c.l.b16 %v183
    %v1017 = vunpack.c.l.b16 %v184
    %v1018 = vunpack.c.l.b16 %v185
    %v1019 = vunpack.c.l.b16 %v186
    %v1020 = vunpack.c.l.b16 %v187
    %v1021 = vunpack.c.l.b16 %v188
    %v1022 = vunpack.c.l.b16 %v189
    %v1023 = vunpack.c.l.b16 %v190
    %v1024 = vunpack.c.l.b16 %v191
    %v1025 = vunpack.c.l.b16 %v192
    %v1026 = vunpack.c.l.b16 %v193
    %v1027 = vunpack.c.l.b16 %v194
    %v1028 = vunpack.c.l.b16 %v195
    %v1029 = vunpack.c.l.b16 %v196
    %v1030 = vunpack.c.l.b16 %v197
    %v1031 = vunpack.c.l.b16 %v198
    %v1032 = vunpack.c.l.b16 %v199
    %v1033 = vunpack.c.l.b16 %v200
    %v1034 = vunpack.c.l.b16 %v201
    %v1035 = vunpack.c.l.b16 %v202
    %v1036 = vunpack.c.l.b16 %v203
    %v1037 = vunpack.c.l.b16 %v204
    %v1038 = vunpack.c.l.b16 %v205
    %v1039 = vunpack.c.l.b16 %v206
    %v1040 = vunpack.c.l.b16 %v207
    %v1041 = vunpack.c.l.b16 %v208
    %v1042 = vunpack.c.l.b16 %v209
    %v1043 = vunpack.c.l.b16 %v210
    %v1044 = vunpack.c.l.b16 %v211
    %v1045 = vunpack.c.l.b16 %v212
    %v1046 = vunpack.c.l.b16 %v213
    %v1047 = vunpack.c.l.b16 %v214
    %v1048 = vunpack.c.l.b16 %v215
    %v1049 = vpack.c.b16 %v986, %v985
    %v1050 = vpack.c.b16 %v988, %v987
    %v1051 = vpack.c.b16 %v990, %v989
    %v1052 = vpack.c.b16 %v992, %v991
    %v1053 = vpack.c.b16 %v994, %v993
    %v1054 = vpack.c.b16 %v996, %v995
    %v1055 = vpack.c.b16 %v998, %v997
    %v1056 = vpack.c.b16 %v1000, %v999
    %v1057 = vpack.c.b16 %v1002, %v1001
    %v1058 = vpack.c.b16 %v1004, %v1003
    %v1059 = vpack.c.b16 %v1006, %v1005
    %v1060 = vpack.c.b16 %v1008, %v1007
    %v1061 = vpack.c.b16 %v1010, %v1009
    %v1062 = vpack.c.b16 %v1012, %v1011
    %v1063 = vpack.c.b16 %v1014, %v1013
    %v1064 = vpack.c.b16 %v1016, %v1015
    %v1065 = vpack.c.b16 %v1018, %v1017
    %v1066 = vpack.c.b16 %v1020, %v1019
    %v1067 = vpack.c.b16 %v1022, %v1021
    %v1068 = vpack.c.b16 %v1024, %v1023
    %v1069 = vpack.c.b16 %v1026, %v1025
    %v1070 = vpack.c.b16 %v1028, %v1027
    %v1071 = vpack.c.b16 %v1030, %v1029
    %v1072 = vpack.c.b16 %v1032, %v1031
    %v1073 = vpack.c.b16 %v1034, %v1033
    %v1074 = vpack.c.b16 %v1036, %v1035
    %v1075 = vpack.c.b16 %v1038, %v1037
    %v1076 = vpack.c.b16 %v1040, %v1039
    %v1077 = vpack.c.b16 %v1042, %v1041
    %v1078 = vpack.c.b16 %v1044, %v1043
    %v1079 = vpack.c.b16 %v1046, %v1045
    %v1080 = vpack.c.b16 %v1048, %v1047
    %1113 = vmatprep.subr.bf16.mxu0 0
    %1114 = vmatpush1.bf16.msra.mxu0 %v1049
    %1115 = vmatprep.subr.bf16.mxu0 0
    %1116 = vmatpush1.bf16.msra.mxu0 %v1050
    %1117 = vmatprep.subr.bf16.mxu0 0
    %1118 = vmatpush1.bf16.msra.mxu0 %v1051
    %1119 = vmatprep.subr.bf16.mxu0 0
    %1120 = vmatpush1.bf16.msra.mxu0 %v1052
    %1121 = vmatprep.subr.bf16.mxu0 0
    %1122 = vmatpush1.bf16.msra.mxu0 %v1053
    %1123 = vmatprep.subr.bf16.mxu0 0
    %1124 = vmatpush1.bf16.msra.mxu0 %v1054
    %1125 = vmatprep.subr.bf16.mxu0 0
    %1126 = vmatpush1.bf16.msra.mxu0 %v1055
    %1127 = vmatprep.subr.bf16.mxu0 0
    %1128 = vmatpush1.bf16.msra.mxu0 %v1056
    %1129 = vmatprep.subr.bf16.mxu0 0
    %1130 = vmatpush1.bf16.msra.mxu0 %v1057
    %1131 = vmatprep.subr.bf16.mxu0 0
    %1132 = vmatpush1.bf16.msra.mxu0 %v1058
    %1133 = vmatprep.subr.bf16.mxu0 0
    %1134 = vmatpush1.bf16.msra.mxu0 %v1059
    %1135 = vmatprep.subr.bf16.mxu0 0
    %1136 = vmatpush1.bf16.msra.mxu0 %v1060
    %1137 = vmatprep.subr.bf16.mxu0 0
    %1138 = vmatpush1.bf16.msra.mxu0 %v1061
    %1139 = vmatprep.subr.bf16.mxu0 0
    %1140 = vmatpush1.bf16.msra.mxu0 %v1062
    %1141 = vmatprep.subr.bf16.mxu0 0
    %1142 = vmatpush1.bf16.msra.mxu0 %v1063
    %1143 = vmatprep.subr.bf16.mxu0 0
    %1144 = vmatpush1.bf16.msra.mxu0 %v1064
    %1145 = vmatprep.mubr.bf16.mxu0 %v912
    %1146 = vmatmul.mubr.bf16.gmra.mrb[0].mxu0 %v911
    %v1147 = vpop.f32.mrb[0].mxu0
    %v1148 = vadd.f32 %v919, %v1147
    %v1149 = vpop.f32.mrb[0].mxu0
    %v1150 = vpop.f32.mrb[0].mxu0
    %v1151 = vpop.f32.mrb[0].mxu0
    %1152 = vdwg.mxu0
    %1153 = vmatprep.subr.bf16.mxu0 0
    %1154 = vmatpush1.bf16.msra.mxu0 %v1065
    %1155 = vmatprep.subr.bf16.mxu0 0
    %1156 = vmatpush1.bf16.msra.mxu0 %v1066
    %1157 = vmatprep.subr.bf16.mxu0 0
    %1158 = vmatpush1.bf16.msra.mxu0 %v1067
    %1159 = vmatprep.subr.bf16.mxu0 0
    %1160 = vmatpush1.bf16.msra.mxu0 %v1068
    %1161 = vmatprep.subr.bf16.mxu0 0
    %1162 = vmatpush1.bf16.msra.mxu0 %v1069
    %1163 = vmatprep.subr.bf16.mxu0 0
    %1164 = vmatpush1.bf16.msra.mxu0 %v1070
    %1165 = vmatprep.subr.bf16.mxu0 0
    %1166 = vmatpush1.bf16.msra.mxu0 %v1071
    %1167 = vmatprep.subr.bf16.mxu0 0
    %1168 = vmatpush1.bf16.msra.mxu0 %v1072
    %1169 = vmatprep.subr.bf16.mxu0 0
    %1170 = vmatpush1.bf16.msra.mxu0 %v1073
    %1171 = vmatprep.subr.bf16.mxu0 0
    %1172 = vmatpush1.bf16.msra.mxu0 %v1074
    %1173 = vmatprep.subr.bf16.mxu0 0
    %1174 = vmatpush1.bf16.msra.mxu0 %v1075
    %1175 = vmatprep.subr.bf16.mxu0 0
    %1176 = vmatpush1.bf16.msra.mxu0 %v1076
    %1177 = vmatprep.subr.bf16.mxu0 0
    %1178 = vmatpush1.bf16.msra.mxu0 %v1077
    %1179 = vmatprep.subr.bf16.mxu0 0
    %1180 = vmatpush1.bf16.msra.mxu0 %v1078
    %1181 = vmatprep.subr.bf16.mxu0 0
    %1182 = vmatpush1.bf16.msra.mxu0 %v1079
    %1183 = vmatprep.subr.bf16.mxu0 0
    %1184 = vmatpush1.bf16.msra.mxu0 %v1080
    %1185 = vmatprep.mubr.bf16.mxu0 %v914
    %1186 = vmatmul.mubr.bf16.gmra.mrb[0].mxu0 %v913
    %v1187 = vpop.f32.mrb[0].mxu0
    %v1188 = vadd.f32 %v1148, %v1187
    %v1189 = vpop.f32.mrb[0].mxu0
    %v1190 = vpop.f32.mrb[0].mxu0
    %v1191 = vpop.f32.mrb[0].mxu0
    %1192 = vdwg.mxu0
    %v1193 = vlaneseq
    %v1194 = vshrl.u32 %v1193, 7
    %vm1195 = vcmp.lt.s32.totalorder %v1194, 8
    %v1196 = vsel %vm1195, %v1188, -inf
    %v1197 = vrot.slane %v1196, 4
    %v1198 = vmax.f32 %v1196, %v1197
    %v1199 = vrot.slane %v1198, 2
    %v1200 = vmax.f32 %v1198, %v1199
    %v1201 = vrot.slane %v1200, 1
    %v1202 = vmax.f32 %v1200, %v1201
    %v1203 = vsub.f32 %v1196, %v1202
    %v1204 = vmul.f32 %v1203, 1.442695
    %v1205 = vpow.pop %v1204
    %v1206 = vrot.slane %v1205, 4
    %v1207 = vadd.f32 %v1205, %v1206
    %v1208 = vrot.slane %v1207, 2
    %v1209 = vadd.f32 %v1207, %v1208
    %v1210 = vrot.slane %v1209, 1
    %v1211 = vadd.f32 %v1209, %v1210
    %v1212 = vlog2.pop %v1211
    %v1213 = vmul.f32 %v1212, 0.6931472
    %v1214 = vadd.f32 %v1202, %v1213
    %v1215 = vsub.f32 %v1188, %v1214
    %1216 = vst [vmem:[#allocation5] sm:$0xff] %v1215
    // Predicated region
    $region42: #{tictactoe_forward.1} parent=1 // pred_check
      _
    $region43: #{tictactoe_forward.1} parent=1 // pred_check_branch
      %1218 = sbr.rel (0) target = $region45
    $region44: #{tictactoe_forward.1} parent=1 // pred_region
      %s1220 = ssub.s32 128, 128
      %1221 = vsyncadd [#allocation4], %s1220
      %s1223 = sshll.u32 [#allocation5], 4
      %s1224 = int_to_ptr.vmem [resolvable:$true] %s1223
      %1226 = dma.vmem_to_hbm [thread:$0]  %s1224, 128, %s9, [#allocation4]
    $region45: #{tictactoe_forward.1} parent=1 // pred_fallthru
      _
    // Predicated region
    $region46: #{tictactoe_forward.1} parent=1 // pred_check
      _
    $region47: #{tictactoe_forward.1} parent=1 // pred_check_branch
      %1228 = sbr.rel (0) target = $region49
    $region48: #{tictactoe_forward.1} parent=1 // pred_region
      %1229 = dma.done [#allocation4], 128
    $region49: #{tictactoe_forward.1} parent=1 // pred_fallthru
      _
    %1230 = vsyncpa [#allocation3], 1
    %1231 = vsyncpa [#allocation4], 1

</llo_original>
